<compile_context>
chip_gen: v6e
topology: v6e:2x2x1
jax: 0.10.0
libtpu: 0.0.40
codegen_flags: <defaults>
</compile_context>

<pallas_src>
import math
import jax
import jax.numpy as jnp
from jax.experimental import pallas as pl
from jax.experimental.pallas import tpu as pltpu

IN_DIM = 2
HIDDEN = 16
OUT_DIM = 3


def _round_up(n, m):
    return ((n + m - 1) // m) * m


def _cdiv(a, b):
    return -(-a // b)


def mlp_kernel(x_ref, w1_ref, b1_ref, w2_ref, b2_ref, o_ref):
    x = x_ref[...]      # [tb, 2]   f32
    w1 = w1_ref[...]    # [2, 16]   f32
    b1 = b1_ref[...]    # [1, 16]   f32
    w2 = w2_ref[...]    # [16, 3]   f32
    b2 = b2_ref[...]    # [1, 3]    f32

    # Layer 1 (K=2): two VPU broadcast-FMAs instead of a degenerate MXU matmul.
    h = x[:, 0:1] * w1[0:1, :] + x[:, 1:2] * w1[1:2, :] + b1
    h = jnp.maximum(h, 0.0)  # ReLU

    # Layer 2 (K=16): MXU matmul. HIGHEST precision keeps exact-enough f32
    # (default TPU dot would truncate f32 operands toward bf16).
    out = jnp.dot(h, w2,
                  preferred_element_type=jnp.float32,
                  precision=jax.lax.Precision.HIGHEST) + b2
    o_ref[...] = out.astype(o_ref.dtype)


def simple_classifier_forward(x, w1, b1, w2, b2, *, block_batch=4096):
    """Computes relu(x @ w1 + b1) @ w2 + b2 on TPU. x: [B, 2] f32 -> [B, 3] f32."""
    B = x.shape[0]
    if B == 0:
        return jnp.zeros((0, OUT_DIM), jnp.float32)

    # Batch tiling: spread B evenly over cdiv(B, block_batch) blocks so a batch
    # just above a multiple of block_batch doesn't pad to 2x; round to sublanes.
    n_blocks = _cdiv(B, block_batch)
    tb = _round_up(_cdiv(B, n_blocks), 8)
    Bp = _round_up(B, tb)
    xp = x if Bp == B else jnp.pad(x, ((0, Bp - B), (0, 0)))

    out = pl.pallas_call(
        mlp_kernel,
        out_shape=jax.ShapeDtypeStruct((Bp, OUT_DIM), jnp.float32),
        grid=(Bp // tb,),
        in_specs=[
            pl.BlockSpec((tb, IN_DIM), lambda i: (i, 0)),       # x: streamed over batch
            pl.BlockSpec((IN_DIM, HIDDEN), lambda i: (0, 0)),   # weights stay VMEM-resident
            pl.BlockSpec((1, HIDDEN), lambda i: (0, 0)),
            pl.BlockSpec((HIDDEN, OUT_DIM), lambda i: (0, 0)),
            pl.BlockSpec((1, OUT_DIM), lambda i: (0, 0)),
        ],
        out_specs=pl.BlockSpec((tb, OUT_DIM), lambda i: (i, 0)),  # narrow (B,3) output
        compiler_params=pltpu.CompilerParams(
            dimension_semantics=("parallel",),        # v7x: shard batch across both TCs
            vmem_limit_bytes=32 * 1024 * 1024,        # explicit; ~a few MiB used at tb=4096
        ),
        cost_estimate=pl.CostEstimate(
            flops=2 * Bp * (IN_DIM * HIDDEN + HIDDEN * OUT_DIM),
            transcendentals=0,
            bytes_accessed=4 * (Bp * IN_DIM + Bp * OUT_DIM
                                + IN_DIM * HIDDEN + HIDDEN
                                + HIDDEN * OUT_DIM + OUT_DIM),
        ),
    )(xp, w1, b1, w2, b2)

    # Only the padded batch rows are sliced off; output lanes are already exact.
    return out[:B]


def init_params(key):
    # Mirrors PyTorch's default Linear init: U(-1/sqrt(fan_in), 1/sqrt(fan_in)).
    # Weights stored as (in_features, out_features) so the kernel computes x @ W + b.
    k1, k2, k3, k4 = jax.random.split(key, 4)
    bound1 = 1.0 / math.sqrt(IN_DIM)
    bound2 = 1.0 / math.sqrt(HIDDEN)
    w1 = jax.random.uniform(k1, (IN_DIM, HIDDEN), jnp.float32, -bound1, bound1)
    b1 = jax.random.uniform(k2, (1, HIDDEN), jnp.float32, -bound1, bound1)
    w2 = jax.random.uniform(k3, (HIDDEN, OUT_DIM), jnp.float32, -bound2, bound2)
    b2 = jax.random.uniform(k4, (1, OUT_DIM), jnp.float32, -bound2, bound2)
    return w1, b1, w2, b2


if __name__ == "__main__":
    key = jax.random.PRNGKey(0)
    kx, kp = jax.random.split(key)
    x = jax.random.normal(kx, (8, IN_DIM), jnp.float32)  # batch=8, in_features=2
    w1, b1, w2, b2 = init_params(kp)

    out = simple_classifier_forward(x, w1, b1, w2, b2)
    jax.block_until_ready(out)

    # Pure-JAX reference of the same forward pass.
    ref = jnp.maximum(x @ w1 + b1, 0.0) @ w2 + b2
    assert out.shape == (8, OUT_DIM)
    assert jnp.allclose(out, ref, atol=1e-5, rtol=1e-5), "mismatch vs reference"
    print("KERNEL_OK")
</pallas_src>

<mosaic_0001>
module attributes {stable_mosaic.version = 11 : i64} {
  func.func @mlp_kernel(%arg0: i32, %arg1: memref<8x2xf32, #tpu.memory_space<vmem>>, %arg2: memref<2x16xf32, #tpu.memory_space<vmem>>, %arg3: memref<1x16xf32, #tpu.memory_space<vmem>>, %arg4: memref<16x3xf32, #tpu.memory_space<vmem>>, %arg5: memref<1x3xf32, #tpu.memory_space<vmem>>, %arg6: memref<8x3xf32, #tpu.memory_space<vmem>>) attributes {dimension_semantics = [#tpu.dimension_semantics<parallel>], iteration_bounds = array<i64: 1>, scalar_prefetch = 0 : i64, scratch_operands = 0 : i64, tpu.core_type = #tpu.core_type<tc>, window_params = [{transform_indices = @transform_0, window_bounds = array<i64: 8, 2>}, {pipeline_mode = #tpu.pipeline_mode<synchronous>, transform_indices = @transform_1, window_bounds = array<i64: 2, 16>}, {pipeline_mode = #tpu.pipeline_mode<synchronous>, transform_indices = @transform_2, window_bounds = array<i64: 1, 16>}, {pipeline_mode = #tpu.pipeline_mode<synchronous>, transform_indices = @transform_3, window_bounds = array<i64: 16, 3>}, {pipeline_mode = #tpu.pipeline_mode<synchronous>, transform_indices = @transform_4, window_bounds = array<i64: 1, 3>}, {transform_indices = @transform_5, window_bounds = array<i64: 8, 3>}]} {
    %c0 = arith.constant 0 : index
    %c0_0 = arith.constant 0 : index
    %0 = vector.load %arg1[%c0, %c0_0] : memref<8x2xf32, #tpu.memory_space<vmem>>, vector<8x2xf32>
    %c0_1 = arith.constant 0 : index
    %c0_2 = arith.constant 0 : index
    %1 = vector.load %arg2[%c0_1, %c0_2] : memref<2x16xf32, #tpu.memory_space<vmem>>, vector<2x16xf32>
    %c0_3 = arith.constant 0 : index
    %c0_4 = arith.constant 0 : index
    %2 = vector.load %arg3[%c0_3, %c0_4] : memref<1x16xf32, #tpu.memory_space<vmem>>, vector<1x16xf32>
    %c0_5 = arith.constant 0 : index
    %c0_6 = arith.constant 0 : index
    %3 = vector.load %arg4[%c0_5, %c0_6] : memref<16x3xf32, #tpu.memory_space<vmem>>, vector<16x3xf32>
    %c0_7 = arith.constant 0 : index
    %c0_8 = arith.constant 0 : index
    %4 = vector.load %arg5[%c0_7, %c0_8] : memref<1x3xf32, #tpu.memory_space<vmem>>, vector<1x3xf32>
    %5 = vector.extract_strided_slice %0 {offsets = [0, 0], sizes = [8, 1], strides = [1, 1]} : vector<8x2xf32> to vector<8x1xf32>
    %6 = vector.extract_strided_slice %1 {offsets = [0, 0], sizes = [1, 16], strides = [1, 1]} : vector<2x16xf32> to vector<1x16xf32>
    %7 = vector.broadcast %5 : vector<8x1xf32> to vector<8x16xf32>
    %8 = vector.broadcast %6 : vector<1x16xf32> to vector<8x16xf32>
    %9 = arith.mulf %7, %8 : vector<8x16xf32>
    %10 = vector.extract_strided_slice %0 {offsets = [0, 1], sizes = [8, 1], strides = [1, 1]} : vector<8x2xf32> to vector<8x1xf32>
    %11 = vector.extract_strided_slice %1 {offsets = [1, 0], sizes = [1, 16], strides = [1, 1]} : vector<2x16xf32> to vector<1x16xf32>
    %12 = vector.broadcast %10 : vector<8x1xf32> to vector<8x16xf32>
    %13 = vector.broadcast %11 : vector<1x16xf32> to vector<8x16xf32>
    %14 = arith.mulf %12, %13 : vector<8x16xf32>
    %15 = arith.addf %9, %14 : vector<8x16xf32>
    %16 = vector.broadcast %2 : vector<1x16xf32> to vector<8x16xf32>
    %17 = arith.addf %15, %16 : vector<8x16xf32>
    %cst = arith.constant 0.000000e+00 : f32
    %18 = vector.broadcast %cst : f32 to vector<8x16xf32>
    %19 = arith.maximumf %17, %18 : vector<8x16xf32>
    %cst_9 = arith.constant dense<0.000000e+00> : vector<8x3xf32>
    %20 = tpu.matmul %19, %3, %cst_9 {dimension_numbers = #tpu.dot_dimension_numbers<[1], [0], [0], [1], [0, 0, 1, 1], [], []>, precision = #tpu.contract_precision<fp32>} : vector<8x16xf32>, vector<16x3xf32>, vector<8x3xf32> -> vector<8x3xf32>
    %21 = vector.broadcast %4 : vector<1x3xf32> to vector<8x3xf32>
    %22 = arith.addf %20, %21 : vector<8x3xf32>
    %c0_10 = arith.constant 0 : index
    %c0_11 = arith.constant 0 : index
    %23 = vector.load %arg6[%c0_10, %c0_11] : memref<8x3xf32, #tpu.memory_space<vmem>>, vector<8x3xf32>
    tpu.vector_store %arg6[%c0_10, %c0_11], %22 {strides = array<i32>} : memref<8x3xf32, #tpu.memory_space<vmem>>, vector<8x3xf32>,
    return
  }
  func.func @transform_0(%arg0: i32) -> (i32, i32) {
    %c0_i32 = arith.constant 0 : i32
    %c0_i32_0 = arith.constant 0 : i32
    return %arg0, %c0_i32 : i32, i32
  }
  func.func @transform_1(%arg0: i32) -> (i32, i32) {
    %c0_i32 = arith.constant 0 : i32
    %c0_i32_0 = arith.constant 0 : i32
    %c0_i32_1 = arith.constant 0 : i32
    return %c0_i32, %c0_i32_0 : i32, i32
  }
  func.func @transform_2(%arg0: i32) -> (i32, i32) {
    %c0_i32 = arith.constant 0 : i32
    %c0_i32_0 = arith.constant 0 : i32
    %c0_i32_1 = arith.constant 0 : i32
    return %c0_i32, %c0_i32_0 : i32, i32
  }
  func.func @transform_3(%arg0: i32) -> (i32, i32) {
    %c0_i32 = arith.constant 0 : i32
    %c0_i32_0 = arith.constant 0 : i32
    %c0_i32_1 = arith.constant 0 : i32
    return %c0_i32, %c0_i32_0 : i32, i32
  }
  func.func @transform_4(%arg0: i32) -> (i32, i32) {
    %c0_i32 = arith.constant 0 : i32
    %c0_i32_0 = arith.constant 0 : i32
    %c0_i32_1 = arith.constant 0 : i32
    return %c0_i32, %c0_i32_0 : i32, i32
  }
  func.func @transform_5(%arg0: i32) -> (i32, i32) {
    %c0_i32 = arith.constant 0 : i32
    %c0_i32_0 = arith.constant 0 : i32
    return %arg0, %c0_i32 : i32, i32
  }
}

</mosaic_0001>

<llo_original>
// kernel: tpu_custom_call.1
$region0: #{tpu_custom_call.1}
  #allocation0 [shape = 'u32[]', space=smem, size = 0x4, offset = 0x4, fixed_abs, tag = 'smem constant byte address 0x4 - core index']
  #allocation1 [shape = 'u32[144,128]{1,0:T(1,128)}', space=vmem, size = 0x12000, scoped, tag = 'internal scratch']
  %s0 = inlined_call_operand.vmem [shape: f32[8,2], index: 0, kind: input, shape index: {}]
  %s1 = inlined_call_operand.vmem [shape: f32[2,16], index: 1, kind: input, shape index: {}]
  %s2 = inlined_call_operand.vmem [shape: f32[1,16], index: 2, kind: input, shape index: {}]
  %s3 = inlined_call_operand.vmem [shape: f32[16,3], index: 3, kind: input, shape index: {}]
  %s4 = inlined_call_operand.vmem [shape: f32[1,3], index: 4, kind: input, shape index: {}]
  %s5 = inlined_call_operand.vmem [shape: f32[8,3], index: 5, kind: output, shape index: {}]
  %s6 = sld [smem:[#allocation0]]
  $region30: #{tpu_custom_call.1} parent=0
    _
  %s8 = ssub.s32 1, %s6
  %s9 = scalar_select 0, %s8, %s6
  // Predicated region
  $region2: #{tpu_custom_call.1} parent=0 // pred_check
    _
  $region3: #{tpu_custom_call.1} parent=0 // pred_check_branch
    %11 = sbr.rel (0) target = $region5
  $region4: #{tpu_custom_call.1} parent=0 // pred_region
    _
  $region5: #{tpu_custom_call.1} parent=0 // pred_fallthru
    _
  // Predicated region
  $region6: #{tpu_custom_call.1} parent=0 // pred_check
    _
  $region7: #{tpu_custom_call.1} parent=0 // pred_check_branch
    %13 = sbr.rel (0) target = $region9
  $region8: #{tpu_custom_call.1} parent=0 // pred_region
    _
  $region9: #{tpu_custom_call.1} parent=0 // pred_fallthru
    _
  // Predicated region
  $region10: #{tpu_custom_call.1} parent=0 // pred_check
    _
  $region11: #{tpu_custom_call.1} parent=0 // pred_check_branch
    %15 = sbr.rel (0) target = $region13
  $region12: #{tpu_custom_call.1} parent=0 // pred_region
    _
  $region13: #{tpu_custom_call.1} parent=0 // pred_fallthru
    _
  // Predicated region
  $region14: #{tpu_custom_call.1} parent=0 // pred_check
    _
  $region15: #{tpu_custom_call.1} parent=0 // pred_check_branch
    %17 = sbr.rel (0) target = $region17
  $region16: #{tpu_custom_call.1} parent=0 // pred_region
    _
  $region17: #{tpu_custom_call.1} parent=0 // pred_fallthru
    _
  // Predicated region
  $region18: #{tpu_custom_call.1} parent=0 // pred_check
    _
  $region19: #{tpu_custom_call.1} parent=0 // pred_check_branch
    %19 = sbr.rel (0) target = $region21
  $region20: #{tpu_custom_call.1} parent=0 // pred_region
    _
  $region21: #{tpu_custom_call.1} parent=0 // pred_fallthru
    _
  %v20 = vld [vmem:[%s0] sm:$0xff]
  %v21 = vld [vmem:[%s1] sm:$0x3]
  %v22 = vld [vmem:[%s2] sm:$0x1]
  %v23 = vld [vmem:[%s3] sm:$0xff]
  %v24 = vld [vmem:[%s3 + $0x8] sm:$0xff]
  %v25 = vld [vmem:[%s4] sm:$0x1]
  %27 = vset.pattern.permute.xlu0 0
  %28 = vperm.xlu0 %27, %v20
  %v29 = vpop.permute.xlu0 %28
  %v31 = vlaneseq
  %v32 = vshrl.u32 %v31, 7
  %v33 = vsub.s32 0, %v32
  %v34 = vrot.slane %v21, %v33
  %v35 = vmul.f32 %v29, %v34
  %36 = vset.pattern.permute.xlu0 1
  %37 = vperm.xlu0 %36, %v20
  %v38 = vpop.permute.xlu0 %37
  %v40 = vlaneseq
  %v41 = vshrl.u32 %v40, 7
  %v42 = vsub.s32 1, %v41
  %v43 = vrot.slane %v21, %v42
  %v44 = vmul.f32 %v38, %v43
  %v45 = vadd.f32 %v35, %v44
  %v47 = vlaneseq
  %v48 = vshrl.u32 %v47, 7
  %v49 = vsub.s32 0, %v48
  %v50 = vrot.slane %v22, %v49
  %v52 = vadd.f32 %v45, %v50
  %v53 = vmax.f32 %v52, 0.0
  %v55 = vlaneseq
  %v56 = vshrl.u32 %v55, 7
  %v57 = vsub.s32 0, %v56
  %v58 = vrot.slane %v25, %v57
  %vm60 = vcmask 130048
  %v62 = vsel %vm60, %v53, 0
  %64 = vmatprep.subr.mxu0 0.0
  %65 = vmatpush1.msra.mxu0 0.0
  %66 = vmatprep.subr.mxu0 0.0
  %67 = vmatpush1.msra.mxu0 0.0
  %68 = vmatprep.subr.mxu0 0.0
  %69 = vmatpush1.msra.mxu0 0.0
  %70 = vmatprep.subr.mxu0 0.0
  %71 = vmatpush1.msra.mxu0 0.0
  %72 = vmatprep.subr.mxu0 0.0
  %73 = vmatpush1.msra.mxu0 0.0
  %74 = vmatprep.subr.mxu0 0.0
  %75 = vmatpush1.msra.mxu0 0.0
  %76 = vmatprep.subr.mxu0 0.0
  %77 = vmatpush1.msra.mxu0 0.0
  %78 = vmatprep.subr.mxu0 0.0
  %79 = vmatpush1.msra.mxu0 0.0
  %80 = vmatprep.subr.mxu0 0.0
  %81 = vmatpush1.msra.mxu0 0.0
  %82 = vmatprep.subr.mxu0 0.0
  %83 = vmatpush1.msra.mxu0 0.0
  %84 = vmatprep.subr.mxu0 0.0
  %85 = vmatpush1.msra.mxu0 0.0
  %86 = vmatprep.subr.mxu0 0.0
  %87 = vmatpush1.msra.mxu0 0.0
  %88 = vmatprep.subr.mxu0 0.0
  %89 = vmatpush1.msra.mxu0 0.0
  %90 = vmatprep.subr.mxu0 0.0
  %91 = vmatpush1.msra.mxu0 0.0
  %92 = vmatprep.subr.mxu0 0.0
  %v93 = vand.u32 %v24, 4294901760
  %94 = vmatpush1.msra.mxu0 %v93
  %95 = vmatprep.subr.mxu0 0.0
  %v96 = vand.u32 %v23, 4294901760
  %97 = vmatpush1.msra.mxu0 %v96
  %98 = vmatprep.subr.mxu0 0.0
  %99 = vmatpush2.msra.mxu0 0.0
  %100 = vmatprep.subr.mxu0 0.0
  %101 = vmatpush2.msra.mxu0 0.0
  %102 = vmatprep.subr.mxu0 0.0
  %103 = vmatpush2.msra.mxu0 0.0
  %104 = vmatprep.subr.mxu0 0.0
  %105 = vmatpush2.msra.mxu0 0.0
  %106 = vmatprep.subr.mxu0 0.0
  %107 = vmatpush2.msra.mxu0 0.0
  %108 = vmatprep.subr.mxu0 0.0
  %109 = vmatpush2.msra.mxu0 0.0
  %110 = vmatprep.subr.mxu0 0.0
  %111 = vmatpush2.msra.mxu0 0.0
  %112 = vmatprep.subr.mxu0 0.0
  %113 = vmatpush2.msra.mxu0 0.0
  %114 = vmatprep.subr.mxu0 0.0
  %115 = vmatpush2.msra.mxu0 0.0
  %116 = vmatprep.subr.mxu0 0.0
  %117 = vmatpush2.msra.mxu0 0.0
  %118 = vmatprep.subr.mxu0 0.0
  %119 = vmatpush2.msra.mxu0 0.0
  %120 = vmatprep.subr.mxu0 0.0
  %121 = vmatpush2.msra.mxu0 0.0
  %122 = vmatprep.subr.mxu0 0.0
  %123 = vmatpush2.msra.mxu0 0.0
  %124 = vmatprep.subr.mxu0 0.0
  %125 = vmatpush2.msra.mxu0 0.0
  %126 = vmatprep.subr.mxu0 0.0
  %127 = vmatpush2.msra.mxu0 0.0
  %128 = vmatprep.subr.mxu0 0.0
  %129 = vmatpush2.msra.mxu0 0.0
  %130 = vmatprep.mubr.f32.mxu0 0.0
  %v131 = vand.u32 %v62, 4294901760
  %v132 = vsub.f32 %v62, %v131
  %v133 = vand.u32 %v132, 4294901760
  %v134 = vsub.f32 %v132, %v133
  %v135 = vand.u32 %v134, 4294901760
  %136 = vmatmul.mubr.f32.gmra.mxu0 %v135
  %v137 = vpop.f32.mrf.mxu0
  %v138 = vadd.f32 %v58, %v137
  %v139 = vpop.f32.mrf.mxu0
  %140 = vdwg.mxu0
  %141 = vmatprep.subr.mxu0 0.0
  %142 = vmatpush1.msra.mxu0 0.0
  %143 = vmatprep.subr.mxu0 0.0
  %144 = vmatpush1.msra.mxu0 0.0
  %145 = vmatprep.subr.mxu0 0.0
  %146 = vmatpush1.msra.mxu0 0.0
  %147 = vmatprep.subr.mxu0 0.0
  %148 = vmatpush1.msra.mxu0 0.0
  %149 = vmatprep.subr.mxu0 0.0
  %150 = vmatpush1.msra.mxu0 0.0
  %151 = vmatprep.subr.mxu0 0.0
  %152 = vmatpush1.msra.mxu0 0.0
  %153 = vmatprep.subr.mxu0 0.0
  %154 = vmatpush1.msra.mxu0 0.0
  %155 = vmatprep.subr.mxu0 0.0
  %156 = vmatpush1.msra.mxu0 0.0
  %157 = vmatprep.subr.mxu0 0.0
  %158 = vmatpush1.msra.mxu0 0.0
  %159 = vmatprep.subr.mxu0 0.0
  %160 = vmatpush1.msra.mxu0 0.0
  %161 = vmatprep.subr.mxu0 0.0
  %162 = vmatpush1.msra.mxu0 0.0
  %163 = vmatprep.subr.mxu0 0.0
  %164 = vmatpush1.msra.mxu0 0.0
  %165 = vmatprep.subr.mxu0 0.0
  %166 = vmatpush1.msra.mxu0 0.0
  %167 = vmatprep.subr.mxu0 0.0
  %168 = vmatpush1.msra.mxu0 0.0
  %169 = vmatprep.subr.mxu0 0.0
  %v170 = vand.u32 %v24, 4294901760
  %v171 = vsub.f32 %v24, %v170
  %v172 = vand.u32 %v171, 4294901760
  %v173 = vsub.f32 %v171, %v172
  %v174 = vand.u32 %v173, 4294901760
  %175 = vmatpush1.msra.mxu0 %v174
  %176 = vmatprep.subr.mxu0 0.0
  %v177 = vand.u32 %v23, 4294901760
  %v178 = vsub.f32 %v23, %v177
  %v179 = vand.u32 %v178, 4294901760
  %v180 = vsub.f32 %v178, %v179
  %v181 = vand.u32 %v180, 4294901760
  %182 = vmatpush1.msra.mxu0 %v181
  %183 = vmatprep.subr.mxu0 0.0
  %184 = vmatpush2.msra.mxu0 0.0
  %185 = vmatprep.subr.mxu0 0.0
  %186 = vmatpush2.msra.mxu0 0.0
  %187 = vmatprep.subr.mxu0 0.0
  %188 = vmatpush2.msra.mxu0 0.0
  %189 = vmatprep.subr.mxu0 0.0
  %190 = vmatpush2.msra.mxu0 0.0
  %191 = vmatprep.subr.mxu0 0.0
  %192 = vmatpush2.msra.mxu0 0.0
  %193 = vmatprep.subr.mxu0 0.0
  %194 = vmatpush2.msra.mxu0 0.0
  %195 = vmatprep.subr.mxu0 0.0
  %196 = vmatpush2.msra.mxu0 0.0
  %197 = vmatprep.subr.mxu0 0.0
  %198 = vmatpush2.msra.mxu0 0.0
  %199 = vmatprep.subr.mxu0 0.0
  %200 = vmatpush2.msra.mxu0 0.0
  %201 = vmatprep.subr.mxu0 0.0
  %202 = vmatpush2.msra.mxu0 0.0
  %203 = vmatprep.subr.mxu0 0.0
  %204 = vmatpush2.msra.mxu0 0.0
  %205 = vmatprep.subr.mxu0 0.0
  %206 = vmatpush2.msra.mxu0 0.0
  %207 = vmatprep.subr.mxu0 0.0
  %208 = vmatpush2.msra.mxu0 0.0
  %209 = vmatprep.subr.mxu0 0.0
  %210 = vmatpush2.msra.mxu0 0.0
  %211 = vmatprep.subr.mxu0 0.0
  %212 = vmatpush2.msra.mxu0 0.0
  %213 = vmatprep.subr.mxu0 0.0
  %214 = vmatpush2.msra.mxu0 0.0
  %215 = vmatprep.mubr.f32.mxu0 0.0
  %v216 = vand.u32 %v62, 4294901760
  %217 = vmatmul.mubr.f32.gmra.mxu0 %v216
  %v218 = vpop.f32.mrf.mxu0
  %v219 = vadd.f32 %v138, %v218
  %v220 = vpop.f32.mrf.mxu0
  %221 = vdwg.mxu0
  %222 = vmatprep.subr.mxu0 0.0
  %223 = vmatpush1.msra.mxu0 0.0
  %224 = vmatprep.subr.mxu0 0.0
  %225 = vmatpush1.msra.mxu0 0.0
  %226 = vmatprep.subr.mxu0 0.0
  %227 = vmatpush1.msra.mxu0 0.0
  %228 = vmatprep.subr.mxu0 0.0
  %229 = vmatpush1.msra.mxu0 0.0
  %230 = vmatprep.subr.mxu0 0.0
  %231 = vmatpush1.msra.mxu0 0.0
  %232 = vmatprep.subr.mxu0 0.0
  %233 = vmatpush1.msra.mxu0 0.0
  %234 = vmatprep.subr.mxu0 0.0
  %235 = vmatpush1.msra.mxu0 0.0
  %236 = vmatprep.subr.mxu0 0.0
  %237 = vmatpush1.msra.mxu0 0.0
  %238 = vmatprep.subr.mxu0 0.0
  %239 = vmatpush1.msra.mxu0 0.0
  %240 = vmatprep.subr.mxu0 0.0
  %241 = vmatpush1.msra.mxu0 0.0
  %242 = vmatprep.subr.mxu0 0.0
  %243 = vmatpush1.msra.mxu0 0.0
  %244 = vmatprep.subr.mxu0 0.0
  %245 = vmatpush1.msra.mxu0 0.0
  %246 = vmatprep.subr.mxu0 0.0
  %247 = vmatpush1.msra.mxu0 0.0
  %248 = vmatprep.subr.mxu0 0.0
  %249 = vmatpush1.msra.mxu0 0.0
  %250 = vmatprep.subr.mxu0 0.0
  %v251 = vand.u32 %v24, 4294901760
  %v252 = vsub.f32 %v24, %v251
  %253 = vmatpush1.msra.mxu0 %v252
  %254 = vmatprep.subr.mxu0 0.0
  %v255 = vand.u32 %v23, 4294901760
  %v256 = vsub.f32 %v23, %v255
  %257 = vmatpush1.msra.mxu0 %v256
  %258 = vmatprep.subr.mxu0 0.0
  %259 = vmatpush2.msra.mxu0 0.0
  %260 = vmatprep.subr.mxu0 0.0
  %261 = vmatpush2.msra.mxu0 0.0
  %262 = vmatprep.subr.mxu0 0.0
  %263 = vmatpush2.msra.mxu0 0.0
  %264 = vmatprep.subr.mxu0 0.0
  %265 = vmatpush2.msra.mxu0 0.0
  %266 = vmatprep.subr.mxu0 0.0
  %267 = vmatpush2.msra.mxu0 0.0
  %268 = vmatprep.subr.mxu0 0.0
  %269 = vmatpush2.msra.mxu0 0.0
  %270 = vmatprep.subr.mxu0 0.0
  %271 = vmatpush2.msra.mxu0 0.0
  %272 = vmatprep.subr.mxu0 0.0
  %273 = vmatpush2.msra.mxu0 0.0
  %274 = vmatprep.subr.mxu0 0.0
  %275 = vmatpush2.msra.mxu0 0.0
  %276 = vmatprep.subr.mxu0 0.0
  %277 = vmatpush2.msra.mxu0 0.0
  %278 = vmatprep.subr.mxu0 0.0
  %279 = vmatpush2.msra.mxu0 0.0
  %280 = vmatprep.subr.mxu0 0.0
  %281 = vmatpush2.msra.mxu0 0.0
  %282 = vmatprep.subr.mxu0 0.0
  %283 = vmatpush2.msra.mxu0 0.0
  %284 = vmatprep.subr.mxu0 0.0
  %285 = vmatpush2.msra.mxu0 0.0
  %286 = vmatprep.subr.mxu0 0.0
  %287 = vmatpush2.msra.mxu0 0.0
  %288 = vmatprep.subr.mxu0 0.0
  %289 = vmatpush2.msra.mxu0 0.0
  %290 = vmatprep.mubr.f32.mxu0 0.0
  %v291 = vand.u32 %v62, 4294901760
  %v292 = vsub.f32 %v62, %v291
  %293 = vmatmul.mubr.f32.gmra.mxu0 %v292
  %v294 = vpop.f32.mrf.mxu0
  %v295 = vadd.f32 %v219, %v294
  %v296 = vpop.f32.mrf.mxu0
  %297 = vdwg.mxu0
  %298 = vmatprep.subr.mxu0 0.0
  %299 = vmatpush1.msra.mxu0 0.0
  %300 = vmatprep.subr.mxu0 0.0
  %301 = vmatpush1.msra.mxu0 0.0
  %302 = vmatprep.subr.mxu0 0.0
  %303 = vmatpush1.msra.mxu0 0.0
  %304 = vmatprep.subr.mxu0 0.0
  %305 = vmatpush1.msra.mxu0 0.0
  %306 = vmatprep.subr.mxu0 0.0
  %307 = vmatpush1.msra.mxu0 0.0
  %308 = vmatprep.subr.mxu0 0.0
  %309 = vmatpush1.msra.mxu0 0.0
  %310 = vmatprep.subr.mxu0 0.0
  %311 = vmatpush1.msra.mxu0 0.0
  %312 = vmatprep.subr.mxu0 0.0
  %313 = vmatpush1.msra.mxu0 0.0
  %314 = vmatprep.subr.mxu0 0.0
  %315 = vmatpush1.msra.mxu0 0.0
  %316 = vmatprep.subr.mxu0 0.0
  %317 = vmatpush1.msra.mxu0 0.0
  %318 = vmatprep.subr.mxu0 0.0
  %319 = vmatpush1.msra.mxu0 0.0
  %320 = vmatprep.subr.mxu0 0.0
  %321 = vmatpush1.msra.mxu0 0.0
  %322 = vmatprep.subr.mxu0 0.0
  %323 = vmatpush1.msra.mxu0 0.0
  %324 = vmatprep.subr.mxu0 0.0
  %325 = vmatpush1.msra.mxu0 0.0
  %326 = vmatprep.subr.mxu0 0.0
  %v327 = vand.u32 %v24, 4294901760
  %328 = vmatpush1.msra.mxu0 %v327
  %329 = vmatprep.subr.mxu0 0.0
  %v330 = vand.u32 %v23, 4294901760
  %331 = vmatpush1.msra.mxu0 %v330
  %332 = vmatprep.subr.mxu0 0.0
  %333 = vmatpush2.msra.mxu0 0.0
  %334 = vmatprep.subr.mxu0 0.0
  %335 = vmatpush2.msra.mxu0 0.0
  %336 = vmatprep.subr.mxu0 0.0
  %337 = vmatpush2.msra.mxu0 0.0
  %338 = vmatprep.subr.mxu0 0.0
  %339 = vmatpush2.msra.mxu0 0.0
  %340 = vmatprep.subr.mxu0 0.0
  %341 = vmatpush2.msra.mxu0 0.0
  %342 = vmatprep.subr.mxu0 0.0
  %343 = vmatpush2.msra.mxu0 0.0
  %344 = vmatprep.subr.mxu0 0.0
  %345 = vmatpush2.msra.mxu0 0.0
  %346 = vmatprep.subr.mxu0 0.0
  %347 = vmatpush2.msra.mxu0 0.0
  %348 = vmatprep.subr.mxu0 0.0
  %349 = vmatpush2.msra.mxu0 0.0
  %350 = vmatprep.subr.mxu0 0.0
  %351 = vmatpush2.msra.mxu0 0.0
  %352 = vmatprep.subr.mxu0 0.0
  %353 = vmatpush2.msra.mxu0 0.0
  %354 = vmatprep.subr.mxu0 0.0
  %355 = vmatpush2.msra.mxu0 0.0
  %356 = vmatprep.subr.mxu0 0.0
  %357 = vmatpush2.msra.mxu0 0.0
  %358 = vmatprep.subr.mxu0 0.0
  %359 = vmatpush2.msra.mxu0 0.0
  %360 = vmatprep.subr.mxu0 0.0
  %361 = vmatpush2.msra.mxu0 0.0
  %362 = vmatprep.subr.mxu0 0.0
  %363 = vmatpush2.msra.mxu0 0.0
  %364 = vmatprep.mubr.f32.mxu0 0.0
  %v365 = vand.u32 %v62, 4294901760
  %v366 = vsub.f32 %v62, %v365
  %v367 = vand.u32 %v366, 4294901760
  %368 = vmatmul.mubr.f32.gmra.mxu0 %v367
  %v369 = vpop.f32.mrf.mxu0
  %v370 = vadd.f32 %v295, %v369
  %v371 = vpop.f32.mrf.mxu0
  %372 = vdwg.mxu0
  %373 = vmatprep.subr.mxu0 0.0
  %374 = vmatpush1.msra.mxu0 0.0
  %375 = vmatprep.subr.mxu0 0.0
  %376 = vmatpush1.msra.mxu0 0.0
  %377 = vmatprep.subr.mxu0 0.0
  %378 = vmatpush1.msra.mxu0 0.0
  %379 = vmatprep.subr.mxu0 0.0
  %380 = vmatpush1.msra.mxu0 0.0
  %381 = vmatprep.subr.mxu0 0.0
  %382 = vmatpush1.msra.mxu0 0.0
  %383 = vmatprep.subr.mxu0 0.0
  %384 = vmatpush1.msra.mxu0 0.0
  %385 = vmatprep.subr.mxu0 0.0
  %386 = vmatpush1.msra.mxu0 0.0
  %387 = vmatprep.subr.mxu0 0.0
  %388 = vmatpush1.msra.mxu0 0.0
  %389 = vmatprep.subr.mxu0 0.0
  %390 = vmatpush1.msra.mxu0 0.0
  %391 = vmatprep.subr.mxu0 0.0
  %392 = vmatpush1.msra.mxu0 0.0
  %393 = vmatprep.subr.mxu0 0.0
  %394 = vmatpush1.msra.mxu0 0.0
  %395 = vmatprep.subr.mxu0 0.0
  %396 = vmatpush1.msra.mxu0 0.0
  %397 = vmatprep.subr.mxu0 0.0
  %398 = vmatpush1.msra.mxu0 0.0
  %399 = vmatprep.subr.mxu0 0.0
  %400 = vmatpush1.msra.mxu0 0.0
  %401 = vmatprep.subr.mxu0 0.0
  %v402 = vand.u32 %v24, 4294901760
  %v403 = vsub.f32 %v24, %v402
  %v404 = vand.u32 %v403, 4294901760
  %405 = vmatpush1.msra.mxu0 %v404
  %406 = vmatprep.subr.mxu0 0.0
  %v407 = vand.u32 %v23, 4294901760
  %v408 = vsub.f32 %v23, %v407
  %v409 = vand.u32 %v408, 4294901760
  %410 = vmatpush1.msra.mxu0 %v409
  %411 = vmatprep.subr.mxu0 0.0
  %412 = vmatpush2.msra.mxu0 0.0
  %413 = vmatprep.subr.mxu0 0.0
  %414 = vmatpush2.msra.mxu0 0.0
  %415 = vmatprep.subr.mxu0 0.0
  %416 = vmatpush2.msra.mxu0 0.0
  %417 = vmatprep.subr.mxu0 0.0
  %418 = vmatpush2.msra.mxu0 0.0
  %419 = vmatprep.subr.mxu0 0.0
  %420 = vmatpush2.msra.mxu0 0.0
  %421 = vmatprep.subr.mxu0 0.0
  %422 = vmatpush2.msra.mxu0 0.0
  %423 = vmatprep.subr.mxu0 0.0
  %424 = vmatpush2.msra.mxu0 0.0
  %425 = vmatprep.subr.mxu0 0.0
  %426 = vmatpush2.msra.mxu0 0.0
  %427 = vmatprep.subr.mxu0 0.0
  %428 = vmatpush2.msra.mxu0 0.0
  %429 = vmatprep.subr.mxu0 0.0
  %430 = vmatpush2.msra.mxu0 0.0
  %431 = vmatprep.subr.mxu0 0.0
  %432 = vmatpush2.msra.mxu0 0.0
  %433 = vmatprep.subr.mxu0 0.0
  %434 = vmatpush2.msra.mxu0 0.0
  %435 = vmatprep.subr.mxu0 0.0
  %436 = vmatpush2.msra.mxu0 0.0
  %437 = vmatprep.subr.mxu0 0.0
  %438 = vmatpush2.msra.mxu0 0.0
  %439 = vmatprep.subr.mxu0 0.0
  %440 = vmatpush2.msra.mxu0 0.0
  %441 = vmatprep.subr.mxu0 0.0
  %442 = vmatpush2.msra.mxu0 0.0
  %443 = vmatprep.mubr.f32.mxu0 0.0
  %v444 = vand.u32 %v62, 4294901760
  %445 = vmatmul.mubr.f32.gmra.mxu0 %v444
  %v446 = vpop.f32.mrf.mxu0
  %v447 = vadd.f32 %v370, %v446
  %v448 = vpop.f32.mrf.mxu0
  %449 = vdwg.mxu0
  %450 = vmatprep.subr.mxu0 0.0
  %451 = vmatpush1.msra.mxu0 0.0
  %452 = vmatprep.subr.mxu0 0.0
  %453 = vmatpush1.msra.mxu0 0.0
  %454 = vmatprep.subr.mxu0 0.0
  %455 = vmatpush1.msra.mxu0 0.0
  %456 = vmatprep.subr.mxu0 0.0
  %457 = vmatpush1.msra.mxu0 0.0
  %458 = vmatprep.subr.mxu0 0.0
  %459 = vmatpush1.msra.mxu0 0.0
  %460 = vmatprep.subr.mxu0 0.0
  %461 = vmatpush1.msra.mxu0 0.0
  %462 = vmatprep.subr.mxu0 0.0
  %463 = vmatpush1.msra.mxu0 0.0
  %464 = vmatprep.subr.mxu0 0.0
  %465 = vmatpush1.msra.mxu0 0.0
  %466 = vmatprep.subr.mxu0 0.0
  %467 = vmatpush1.msra.mxu0 0.0
  %468 = vmatprep.subr.mxu0 0.0
  %469 = vmatpush1.msra.mxu0 0.0
  %470 = vmatprep.subr.mxu0 0.0
  %471 = vmatpush1.msra.mxu0 0.0
  %472 = vmatprep.subr.mxu0 0.0
  %473 = vmatpush1.msra.mxu0 0.0
  %474 = vmatprep.subr.mxu0 0.0
  %475 = vmatpush1.msra.mxu0 0.0
  %476 = vmatprep.subr.mxu0 0.0
  %477 = vmatpush1.msra.mxu0 0.0
  %478 = vmatprep.subr.mxu0 0.0
  %v479 = vand.u32 %v24, 4294901760
  %480 = vmatpush1.msra.mxu0 %v479
  %481 = vmatprep.subr.mxu0 0.0
  %v482 = vand.u32 %v23, 4294901760
  %483 = vmatpush1.msra.mxu0 %v482
  %484 = vmatprep.subr.mxu0 0.0
  %485 = vmatpush2.msra.mxu0 0.0
  %486 = vmatprep.subr.mxu0 0.0
  %487 = vmatpush2.msra.mxu0 0.0
  %488 = vmatprep.subr.mxu0 0.0
  %489 = vmatpush2.msra.mxu0 0.0
  %490 = vmatprep.subr.mxu0 0.0
  %491 = vmatpush2.msra.mxu0 0.0
  %492 = vmatprep.subr.mxu0 0.0
  %493 = vmatpush2.msra.mxu0 0.0
  %494 = vmatprep.subr.mxu0 0.0
  %495 = vmatpush2.msra.mxu0 0.0
  %496 = vmatprep.subr.mxu0 0.0
  %497 = vmatpush2.msra.mxu0 0.0
  %498 = vmatprep.subr.mxu0 0.0
  %499 = vmatpush2.msra.mxu0 0.0
  %500 = vmatprep.subr.mxu0 0.0
  %501 = vmatpush2.msra.mxu0 0.0
  %502 = vmatprep.subr.mxu0 0.0
  %503 = vmatpush2.msra.mxu0 0.0
  %504 = vmatprep.subr.mxu0 0.0
  %505 = vmatpush2.msra.mxu0 0.0
  %506 = vmatprep.subr.mxu0 0.0
  %507 = vmatpush2.msra.mxu0 0.0
  %508 = vmatprep.subr.mxu0 0.0
  %509 = vmatpush2.msra.mxu0 0.0
  %510 = vmatprep.subr.mxu0 0.0
  %511 = vmatpush2.msra.mxu0 0.0
  %512 = vmatprep.subr.mxu0 0.0
  %513 = vmatpush2.msra.mxu0 0.0
  %514 = vmatprep.subr.mxu0 0.0
  %515 = vmatpush2.msra.mxu0 0.0
  %516 = vmatprep.mubr.f32.mxu0 0.0
  %v517 = vand.u32 %v62, 4294901760
  %518 = vmatmul.mubr.f32.gmra.mxu0 %v517
  %v519 = vpop.f32.mrf.mxu0
  %v520 = vadd.f32 %v447, %v519
  %v521 = vpop.f32.mrf.mxu0
  %522 = vdwg.mxu0
  %vm523 = vcmask 23552
  %524 = vst.msk [vmem:[%s5] sm:$0xff] %vm523, %v520
  // Predicated region
  $region22: #{tpu_custom_call.1} parent=0 // pred_check
    _
  $region23: #{tpu_custom_call.1} parent=0 // pred_check_branch
    %526 = sbr.rel (0) target = $region25
  $region24: #{tpu_custom_call.1} parent=0 // pred_region
    _
  $region25: #{tpu_custom_call.1} parent=0 // pred_fallthru
    _
  // Predicated region
  $region26: #{tpu_custom_call.1} parent=0 // pred_check
    _
  $region27: #{tpu_custom_call.1} parent=0 // pred_check_branch
    %528 = sbr.rel (0) target = $region29
  $region28: #{tpu_custom_call.1} parent=0 // pred_region
    _
  $region29: #{tpu_custom_call.1} parent=0 // pred_fallthru
    _

</llo_original>
